<compile_context>
chip_gen: v7x
topology: tpu7x:2x2x1
jax: 0.10.0
libtpu: 0.0.40
codegen_flags: <defaults>
</compile_context>

<pallas_src>
import functools
import math

import jax
import jax.numpy as jnp
from jax.experimental import pallas as pl
from jax.experimental.pallas import tpu as pltpu


# ----------------------------------------------------------------------------
# Fused mapping-network kernel: all layers + diagonal grid selection
# ----------------------------------------------------------------------------
def _fused_mapping_kernel(z_ref, w0_ref, w_ref, b_ref, o_ref, *,
                          num_layers, L, G, m, dot_dtype):
    """Whole mapping network for one batch tile.

    z_ref  : (bt, Kp)   latent expanded to lane-dense width (z[b, g] at col g*m+j)
    w0_ref : (1, Kp)    layer-0 per-group scale (gains folded), VMEM-resident
    w_ref  : (n_wb, Kp, Kp) block-diag weights for layers 1.. (sqrt2 folded)
    b_ref  : (num_layers, 1, Kp) biases (gains folded)
    o_ref  : (bt, Kp)   diagonal-selected grid output (times sqrt2 at the end)
    """
    bt, Kp = o_ref.shape
    first_out = num_layers - L
    sqrt2 = jnp.float32(math.sqrt(2.0))

    # leaky-relu WITHOUT the sqrt(2) gain: the gain is folded into the next
    # layer's weights (chain) and into the single final output scale (grid).
    def lrelu(y):
        return jnp.maximum(y, jnp.float32(0.2) * y)

    # Diagonal grid-selection index, generated in-kernel (no HBM mask):
    #   sel[b_local, g*m + j] = (b_global*G + g) % L
    # This is exactly the eye-mask reduce of the reference for ANY z_dim
    # (the only requirement, as in PyTorch, is that the final view divides).
    row0 = pl.program_id(0) * bt
    row = jax.lax.broadcasted_iota(jnp.int32, (bt, Kp), 0) + row0
    col = jax.lax.broadcasted_iota(jnp.int32, (bt, Kp), 1)
    grp = (col >> int(math.log2(m))) if (m & (m - 1)) == 0 else col // m
    pid = row * G + grp
    sel = (pid & (L - 1)) if (L & (L - 1)) == 0 else pid % L

    # Accumulate selected rows straight into o_ref (VMEM) instead of carrying a
    # separate live accumulator next to h across every unrolled matmul.
    def collect(h, idx):
        k = idx - first_out
        if k == 0:
            o_ref[...] = jnp.where(sel == 0, h, 0.0)
        elif k > 0:
            o_ref[...] = o_ref[...] + jnp.where(sel == k, h, 0.0)

    # Layer 0: per-group scalar input -> pure VPU broadcast-multiply (no MXU).
    h = lrelu(z_ref[...] * w0_ref[...] + b_ref[0])
    collect(h, 0)

    # Layers 1..num_layers-1: block-diagonal (Kp,Kp) matmuls, weights resident.
    for idx in range(1, num_layers):
        h = jnp.dot(h.astype(dot_dtype), w_ref[idx - 1],
                    preferred_element_type=jnp.float32)
        h = lrelu(h + b_ref[idx])
        collect(h, idx)

    # Apply the folded lrelu sqrt(2) gain of every collected layer once.
    o_ref[...] = o_ref[...] * sqrt2


def fused_mapping(z_exp, w0_flat, w_bd, b_all, *, num_layers, L, G, m, bt):
    """Single pallas_call for the whole network. Returns (B_pad, Kp) f32."""
    B_pad, Kp = z_exp.shape
    grid = (B_pad // bt,)
    dot_dtype = w_bd.dtype

    # VMEM footprint -> explicit scoped-VMEM limit (v5e default is only 16 MiB).
    resident = (w_bd.size * w_bd.dtype.itemsize
                + b_all.size * b_all.dtype.itemsize
                + w0_flat.size * w0_flat.dtype.itemsize)
    streamed = 2 * 2 * bt * Kp * 4        # z + out tiles, double-buffered
    temps = 6 * bt * Kp * 4               # h / select temporaries (generous)
    vmem_limit = int(min(64 * 2**20,
                         max(32 * 2**20, 2 * (resident + streamed + temps))))

    kernel = functools.partial(_fused_mapping_kernel, num_layers=num_layers,
                               L=L, G=G, m=m, dot_dtype=dot_dtype)
    return pl.pallas_call(
        kernel,
        out_shape=jax.ShapeDtypeStruct((B_pad, Kp), jnp.float32),
        grid=grid,
        in_specs=[
            pl.BlockSpec((bt, Kp), lambda i: (i, 0)),            # expanded z rows
            pl.BlockSpec(memory_space=pltpu.MemorySpace.VMEM),   # layer-0 scale
            pl.BlockSpec(memory_space=pltpu.MemorySpace.VMEM),   # block-diag W
            pl.BlockSpec(memory_space=pltpu.MemorySpace.VMEM),   # biases
        ],
        out_specs=pl.BlockSpec((bt, Kp), lambda i: (i, 0)),
        compiler_params=pltpu.CompilerParams(
            dimension_semantics=("parallel",),
            vmem_limit_bytes=vmem_limit),
    )(z_exp, w0_flat, w_bd, b_all)


# ----------------------------------------------------------------------------
# One-time packing: fold lr gains + lrelu sqrt(2), build padded block-diagonals
# (hoisted out of the per-call path; call once whenever params change)
# ----------------------------------------------------------------------------
def pack_params(params, *, z_dim, m, lane=128, dot_dtype=jnp.bfloat16):
    G = z_dim
    K = G * m
    Kp = ((K + lane - 1) // lane) * lane          # lane-dense last dim
    sqrt2 = math.sqrt(2.0)

    def pad_row(v):                               # (K,) -> (1, Kp)
        return jnp.zeros((1, Kp), jnp.float32).at[0, :K].set(v)

    p0 = params[0]
    # layer 0 is a per-group scalar scale -> flat vector for the VPU path
    w0_flat = pad_row((p0['w'] * p0['wg']).reshape(K))           # (G,1,m)->(K,)
    biases = [pad_row((p0['b'] * p0['bg']).reshape(K))]

    eye_g = jnp.eye(G, dtype=jnp.float32)
    w_blocks = []
    for p in params[1:]:
        # fold the PREVIOUS layer's lrelu sqrt(2) gain into this layer's weight
        w = p['w'] * (p['wg'] * sqrt2)                            # (G, m, m)
        bd = jnp.einsum('gh,gij->gihj', eye_g, w).reshape(K, K)
        bd_p = jnp.zeros((Kp, Kp), jnp.float32).at[:K, :K].set(bd)
        w_blocks.append(bd_p.astype(dot_dtype))
        biases.append(pad_row((p['b'] * p['bg']).reshape(K)))
    if not w_blocks:                              # num_layers == 1: never read
        w_blocks.append(jnp.zeros((Kp, Kp), dot_dtype))
    return w0_flat, jnp.stack(w_blocks, 0), jnp.stack(biases, 0)


# ----------------------------------------------------------------------------
# Parameter init (deterministic, mirrors GroupFullyConnectedLayer.__init__)
# ----------------------------------------------------------------------------
def init_params(key, *, z_dim, w_dim, num_layers, out_num_layers,
                lr_multiplier):
    m_w_dim = w_dim // out_num_layers
    # c_dim == 0  =>  embed_features == 0
    features = [1] + [m_w_dim] * num_layers
    params = []
    for idx in range(num_layers):
        pin, pout = features[idx], features[idx + 1]
        key, k1 = jax.random.split(key)
        # torch.randn([groups, per_group_in, per_group_out]) / lr_multiplier
        w = jax.random.normal(k1, (z_dim, pin, pout), jnp.float32) / lr_multiplier
        b = jnp.zeros((z_dim * pout,), jnp.float32)               # bias_init = 0
        params.append(dict(
            w=w, b=b,
            wg=lr_multiplier / math.sqrt(pin),                    # weight_gain
            bg=lr_multiplier,                                     # bias_gain
        ))
    return params


# ----------------------------------------------------------------------------
# Batch tiling: pad to multiples of 8, >=2 grid steps when the batch allows it
# ----------------------------------------------------------------------------
def _choose_tiles(B, bt_max=512):
    b8 = ((B + 7) // 8) * 8
    bt = min(bt_max, b8)
    if b8 > 8 and b8 // bt < 2:        # give v7x's 2nd TensorCore a grid step
        bt = ((b8 // 2 + 7) // 8) * 8
    B_pad = ((b8 + bt - 1) // bt) * bt
    return bt, B_pad


# ----------------------------------------------------------------------------
# Full forward (packed weights passed in; all compute in one Pallas kernel)
# ----------------------------------------------------------------------------
def mapping_forward(packed, z, *, num_ws, num_layers, out_num_layers, w_dim,
                    bt_max=512):
    w0_flat, w_bd, b_all = packed
    B, G = z.shape
    L = out_num_layers
    assert L <= num_layers, (L, num_layers)          # constructor invariant
    m = w_dim // L
    K = G * m
    Kp = w0_flat.shape[1]
    # Same divisibility requirement as the PyTorch .view() calls.
    assert (B * K) % (num_ws * w_dim) == 0, (B, K, num_ws, w_dim)

    bt, B_pad = _choose_tiles(B, bt_max)
    # Expand z for the VPU layer-0 path: z_exp[b, g*m + j] = z[b, g].
    z_exp = jnp.repeat(z.astype(jnp.float32), m, axis=1)          # (B, K)
    z_exp = jnp.pad(z_exp, ((0, B_pad - B), (0, Kp - K)))

    out = fused_mapping(z_exp, w0_flat, w_bd, b_all,
                        num_layers=num_layers, L=L, G=G, m=m, bt=bt)
    out = out[:B, :K]
    # Row-major flat order of (B, G*m) equals that of (N, num_ws, L, m) after
    # the diagonal selection (holds for any z_dim) -> pure metadata reshape.
    return out.reshape(-1, num_ws, w_dim)


# ----------------------------------------------------------------------------
# Pure-JAX reference (mirrors the PyTorch forward) for correctness check
# ----------------------------------------------------------------------------
def reference_forward(params, z, *, num_ws, num_layers, out_num_layers, w_dim):
    B, G = z.shape
    L = out_num_layers
    m = w_dim // L
    x = z.reshape(B, G, 1)
    grid_out = []
    for idx, p in enumerate(params):
        w = p['w'] * p['wg']                                      # (G, pin, pout)
        y = jnp.einsum('bgi,gio->bgo', x, w)
        b = (p['b'] * p['bg']).reshape(G, -1)
        y = y + b[None]
        y = jnp.where(y >= 0, y, 0.2 * y) * jnp.float32(math.sqrt(2.0))
        x = y
        if idx + out_num_layers >= num_layers:
            grid_out.append(x.reshape(B, G, 1, m))
    g = jnp.concatenate(grid_out, axis=2).reshape(-1, num_ws, L, L, m)
    mask = jnp.eye(L, dtype=g.dtype).reshape(1, 1, L, L, 1)
    return (mask * g).sum(axis=3).reshape(-1, num_ws, w_dim)


if __name__ == "__main__":
    # Small configuration consistent with the module's constructor asserts.
    B = 2
    num_ws = 2
    num_layers = 4
    out_num_layers = 4
    w_dim = 32                       # m_w_dim = w_dim // out_num_layers = 8
    z_dim = num_ws * out_num_layers  # = 8
    lr_multiplier = 0.01
    m = w_dim // out_num_layers

    key = jax.random.PRNGKey(0)
    kp, kz, kz2 = jax.random.split(key, 3)
    params = init_params(kp, z_dim=z_dim, w_dim=w_dim, num_layers=num_layers,
                         out_num_layers=out_num_layers,
                         lr_multiplier=lr_multiplier)
    z = jax.random.normal(kz, (B, z_dim), jnp.float32)

    fwd = jax.jit(functools.partial(
        mapping_forward, num_ws=num_ws, num_layers=num_layers,
        out_num_layers=out_num_layers, w_dim=w_dim))

    ref = jax.block_until_ready(reference_forward(
        params, z, num_ws=num_ws, num_layers=num_layers,
        out_num_layers=out_num_layers, w_dim=w_dim))

    # (1) exact path: f32 packed weights, tight tolerance.
    packed_f32 = pack_params(params, z_dim=z_dim, m=m, dot_dtype=jnp.float32)
    out_f32 = jax.block_until_ready(fwd(packed_f32, z))
    assert out_f32.shape == (B, num_ws, w_dim), out_f32.shape
    assert jnp.allclose(out_f32, ref, rtol=1e-4, atol=1e-4), (
        float(jnp.max(jnp.abs(out_f32 - ref))))

    # (2) performance path: bf16 packed weights (native MXU input dtype).
    packed_bf16 = pack_params(params, z_dim=z_dim, m=m, dot_dtype=jnp.bfloat16)
    out_bf16 = jax.block_until_ready(fwd(packed_bf16, z))
    assert jnp.allclose(out_bf16, ref, rtol=5e-2, atol=5e-2), (
        float(jnp.max(jnp.abs(out_bf16 - ref))))

    # (3) batch-padding / multi-step-grid path (B not a multiple of the tile).
    B2 = 20
    z2 = jax.random.normal(kz2, (B2, z_dim), jnp.float32)
    ref2 = jax.block_until_ready(reference_forward(
        params, z2, num_ws=num_ws, num_layers=num_layers,
        out_num_layers=out_num_layers, w_dim=w_dim))
    out2 = jax.block_until_ready(fwd(packed_f32, z2))
    assert out2.shape == ref2.shape, (out2.shape, ref2.shape)
    assert jnp.allclose(out2, ref2, rtol=1e-4, atol=1e-4), (
        float(jnp.max(jnp.abs(out2 - ref2))))

    print("KERNEL_OK")
</pallas_src>

<mosaic_0001>
module attributes {stable_mosaic.version = 11 : i64} {
  func.func @_fused_mapping_kernel(%arg0: i32, %arg1: memref<8x128xf32, #tpu.memory_space<vmem>>, %arg2: memref<1x128xf32, #tpu.memory_space<vmem>>, %arg3: memref<3x128x128xf32, #tpu.memory_space<vmem>>, %arg4: memref<4x1x128xf32, #tpu.memory_space<vmem>>, %arg5: memref<8x128xf32, #tpu.memory_space<vmem>>) attributes {dimension_semantics = [#tpu.dimension_semantics<parallel>], iteration_bounds = array<i64: 1>, scalar_prefetch = 0 : i64, scratch_operands = 0 : i64, tpu.core_type = #tpu.core_type<tc>, window_params = [{transform_indices = @transform_0, window_bounds = array<i64: 8, 128>}, {pipeline_mode = #tpu.pipeline_mode<synchronous>, transform_indices = @transform_1, window_bounds = array<i64: 1, 128>}, {pipeline_mode = #tpu.pipeline_mode<synchronous>, transform_indices = @transform_2, window_bounds = array<i64: 3, 128, 128>}, {pipeline_mode = #tpu.pipeline_mode<synchronous>, transform_indices = @transform_3, window_bounds = array<i64: 4, 1, 128>}, {transform_indices = @transform_4, window_bounds = array<i64: 8, 128>}]} {
    %c8_i32 = arith.constant 8 : i32
    %0 = arith.muli %arg0, %c8_i32 : i32
    %1 = tpu.iota {dimensions = array<i32: 0>} : vector<8x128xi32>
    %2 = vector.broadcast %0 : i32 to vector<8x128xi32>
    %3 = arith.addi %1, %2 : vector<8x128xi32>
    %4 = tpu.iota {dimensions = array<i32: 1>} : vector<8x128xi32>
    %c3_i32 = arith.constant 3 : i32
    %5 = vector.broadcast %c3_i32 : i32 to vector<8x128xi32>
    %6 = arith.shrsi %4, %5 : vector<8x128xi32>
    %c8_i32_0 = arith.constant 8 : i32
    %7 = vector.broadcast %c8_i32_0 : i32 to vector<8x128xi32>
    %8 = arith.muli %3, %7 : vector<8x128xi32>
    %9 = arith.addi %8, %6 : vector<8x128xi32>
    %c3_i32_1 = arith.constant 3 : i32
    %10 = vector.broadcast %c3_i32_1 : i32 to vector<8x128xi32>
    %11 = arith.andi %9, %10 : vector<8x128xi32>
    %c0 = arith.constant 0 : index
    %c0_2 = arith.constant 0 : index
    %12 = vector.load %arg1[%c0, %c0_2] : memref<8x128xf32, #tpu.memory_space<vmem>>, vector<8x128xf32>
    %c0_3 = arith.constant 0 : index
    %c0_4 = arith.constant 0 : index
    %13 = vector.load %arg2[%c0_3, %c0_4] : memref<1x128xf32, #tpu.memory_space<vmem>>, vector<1x128xf32>
    %14 = vector.broadcast %13 : vector<1x128xf32> to vector<8x128xf32>
    %15 = arith.mulf %12, %14 : vector<8x128xf32>
    %c0_5 = arith.constant 0 : index
    %c0_6 = arith.constant 0 : index
    %c0_7 = arith.constant 0 : index
    %16 = vector.load %arg4[%c0_5, %c0_6, %c0_7] : memref<4x1x128xf32, #tpu.memory_space<vmem>>, vector<1x1x128xf32>
    %17 = vector.shape_cast %16 : vector<1x1x128xf32> to vector<1x128xf32>
    %18 = vector.broadcast %17 : vector<1x128xf32> to vector<8x128xf32>
    %19 = arith.addf %15, %18 : vector<8x128xf32>
    %cst = arith.constant 2.000000e-01 : f32
    %20 = vector.broadcast %cst : f32 to vector<8x128xf32>
    %21 = arith.mulf %20, %19 : vector<8x128xf32>
    %22 = arith.maximumf %19, %21 : vector<8x128xf32>
    %c0_i32 = arith.constant 0 : i32
    %23 = vector.broadcast %c0_i32 : i32 to vector<8x128xi32>
    %24 = arith.cmpi eq, %11, %23 : vector<8x128xi32>
    %cst_8 = arith.constant 0.000000e+00 : f32
    %25 = vector.broadcast %cst_8 : f32 to vector<8x128xf32>
    %26 = arith.select %24, %22, %25 : vector<8x128xi1>, vector<8x128xf32>
    %c0_9 = arith.constant 0 : index
    %c0_10 = arith.constant 0 : index
    %27 = vector.load %arg5[%c0_9, %c0_10] : memref<8x128xf32, #tpu.memory_space<vmem>>, vector<8x128xf32>
    tpu.vector_store %arg5[%c0_9, %c0_10], %26 {strides = array<i32>} : memref<8x128xf32, #tpu.memory_space<vmem>>, vector<8x128xf32>,
    %c0_11 = arith.constant 0 : index
    %c0_12 = arith.constant 0 : index
    %c0_13 = arith.constant 0 : index
    %28 = vector.load %arg3[%c0_11, %c0_12, %c0_13] : memref<3x128x128xf32, #tpu.memory_space<vmem>>, vector<1x128x128xf32>
    %29 = vector.shape_cast %28 : vector<1x128x128xf32> to vector<128x128xf32>
    %cst_14 = arith.constant dense<0.000000e+00> : vector<8x128xf32>
    %30 = tpu.matmul %22, %29, %cst_14 {dimension_numbers = #tpu.dot_dimension_numbers<[1], [0], [0], [1], [0, 0, 1, 1], [], []>} : vector<8x128xf32>, vector<128x128xf32>, vector<8x128xf32> -> vector<8x128xf32>
    %c1 = arith.constant 1 : index
    %c0_15 = arith.constant 0 : index
    %c0_16 = arith.constant 0 : index
    %31 = vector.load %arg4[%c1, %c0_15, %c0_16] : memref<4x1x128xf32, #tpu.memory_space<vmem>>, vector<1x1x128xf32>
    %32 = vector.shape_cast %31 : vector<1x1x128xf32> to vector<1x128xf32>
    %33 = vector.broadcast %32 : vector<1x128xf32> to vector<8x128xf32>
    %34 = arith.addf %30, %33 : vector<8x128xf32>
    %cst_17 = arith.constant 2.000000e-01 : f32
    %35 = vector.broadcast %cst_17 : f32 to vector<8x128xf32>
    %36 = arith.mulf %35, %34 : vector<8x128xf32>
    %37 = arith.maximumf %34, %36 : vector<8x128xf32>
    %c0_18 = arith.constant 0 : index
    %c0_19 = arith.constant 0 : index
    %38 = vector.load %arg5[%c0_18, %c0_19] : memref<8x128xf32, #tpu.memory_space<vmem>>, vector<8x128xf32>
    %c1_i32 = arith.constant 1 : i32
    %39 = vector.broadcast %c1_i32 : i32 to vector<8x128xi32>
    %40 = arith.cmpi eq, %11, %39 : vector<8x128xi32>
    %cst_20 = arith.constant 0.000000e+00 : f32
    %41 = vector.broadcast %cst_20 : f32 to vector<8x128xf32>
    %42 = arith.select %40, %37, %41 : vector<8x128xi1>, vector<8x128xf32>
    %43 = arith.addf %38, %42 : vector<8x128xf32>
    %c0_21 = arith.constant 0 : index
    %c0_22 = arith.constant 0 : index
    %44 = vector.load %arg5[%c0_21, %c0_22] : memref<8x128xf32, #tpu.memory_space<vmem>>, vector<8x128xf32>
    tpu.vector_store %arg5[%c0_21, %c0_22], %43 {strides = array<i32>} : memref<8x128xf32, #tpu.memory_space<vmem>>, vector<8x128xf32>,
    %c1_23 = arith.constant 1 : index
    %c0_24 = arith.constant 0 : index
    %c0_25 = arith.constant 0 : index
    %45 = vector.load %arg3[%c1_23, %c0_24, %c0_25] : memref<3x128x128xf32, #tpu.memory_space<vmem>>, vector<1x128x128xf32>
    %46 = vector.shape_cast %45 : vector<1x128x128xf32> to vector<128x128xf32>
    %cst_26 = arith.constant dense<0.000000e+00> : vector<8x128xf32>
    %47 = tpu.matmul %37, %46, %cst_26 {dimension_numbers = #tpu.dot_dimension_numbers<[1], [0], [0], [1], [0, 0, 1, 1], [], []>} : vector<8x128xf32>, vector<128x128xf32>, vector<8x128xf32> -> vector<8x128xf32>
    %c2 = arith.constant 2 : index
    %c0_27 = arith.constant 0 : index
    %c0_28 = arith.constant 0 : index
    %48 = vector.load %arg4[%c2, %c0_27, %c0_28] : memref<4x1x128xf32, #tpu.memory_space<vmem>>, vector<1x1x128xf32>
    %49 = vector.shape_cast %48 : vector<1x1x128xf32> to vector<1x128xf32>
    %50 = vector.broadcast %49 : vector<1x128xf32> to vector<8x128xf32>
    %51 = arith.addf %47, %50 : vector<8x128xf32>
    %cst_29 = arith.constant 2.000000e-01 : f32
    %52 = vector.broadcast %cst_29 : f32 to vector<8x128xf32>
    %53 = arith.mulf %52, %51 : vector<8x128xf32>
    %54 = arith.maximumf %51, %53 : vector<8x128xf32>
    %c0_30 = arith.constant 0 : index
    %c0_31 = arith.constant 0 : index
    %55 = vector.load %arg5[%c0_30, %c0_31] : memref<8x128xf32, #tpu.memory_space<vmem>>, vector<8x128xf32>
    %c2_i32 = arith.constant 2 : i32
    %56 = vector.broadcast %c2_i32 : i32 to vector<8x128xi32>
    %57 = arith.cmpi eq, %11, %56 : vector<8x128xi32>
    %cst_32 = arith.constant 0.000000e+00 : f32
    %58 = vector.broadcast %cst_32 : f32 to vector<8x128xf32>
    %59 = arith.select %57, %54, %58 : vector<8x128xi1>, vector<8x128xf32>
    %60 = arith.addf %55, %59 : vector<8x128xf32>
    %c0_33 = arith.constant 0 : index
    %c0_34 = arith.constant 0 : index
    %61 = vector.load %arg5[%c0_33, %c0_34] : memref<8x128xf32, #tpu.memory_space<vmem>>, vector<8x128xf32>
    tpu.vector_store %arg5[%c0_33, %c0_34], %60 {strides = array<i32>} : memref<8x128xf32, #tpu.memory_space<vmem>>, vector<8x128xf32>,
    %c2_35 = arith.constant 2 : index
    %c0_36 = arith.constant 0 : index
    %c0_37 = arith.constant 0 : index
    %62 = vector.load %arg3[%c2_35, %c0_36, %c0_37] : memref<3x128x128xf32, #tpu.memory_space<vmem>>, vector<1x128x128xf32>
    %63 = vector.shape_cast %62 : vector<1x128x128xf32> to vector<128x128xf32>
    %cst_38 = arith.constant dense<0.000000e+00> : vector<8x128xf32>
    %64 = tpu.matmul %54, %63, %cst_38 {dimension_numbers = #tpu.dot_dimension_numbers<[1], [0], [0], [1], [0, 0, 1, 1], [], []>} : vector<8x128xf32>, vector<128x128xf32>, vector<8x128xf32> -> vector<8x128xf32>
    %c3 = arith.constant 3 : index
    %c0_39 = arith.constant 0 : index
    %c0_40 = arith.constant 0 : index
    %65 = vector.load %arg4[%c3, %c0_39, %c0_40] : memref<4x1x128xf32, #tpu.memory_space<vmem>>, vector<1x1x128xf32>
    %66 = vector.shape_cast %65 : vector<1x1x128xf32> to vector<1x128xf32>
    %67 = vector.broadcast %66 : vector<1x128xf32> to vector<8x128xf32>
    %68 = arith.addf %64, %67 : vector<8x128xf32>
    %cst_41 = arith.constant 2.000000e-01 : f32
    %69 = vector.broadcast %cst_41 : f32 to vector<8x128xf32>
    %70 = arith.mulf %69, %68 : vector<8x128xf32>
    %71 = arith.maximumf %68, %70 : vector<8x128xf32>
    %c0_42 = arith.constant 0 : index
    %c0_43 = arith.constant 0 : index
    %72 = vector.load %arg5[%c0_42, %c0_43] : memref<8x128xf32, #tpu.memory_space<vmem>>, vector<8x128xf32>
    %c3_i32_44 = arith.constant 3 : i32
    %73 = vector.broadcast %c3_i32_44 : i32 to vector<8x128xi32>
    %74 = arith.cmpi eq, %11, %73 : vector<8x128xi32>
    %cst_45 = arith.constant 0.000000e+00 : f32
    %75 = vector.broadcast %cst_45 : f32 to vector<8x128xf32>
    %76 = arith.select %74, %71, %75 : vector<8x128xi1>, vector<8x128xf32>
    %77 = arith.addf %72, %76 : vector<8x128xf32>
    %c0_46 = arith.constant 0 : index
    %c0_47 = arith.constant 0 : index
    %78 = vector.load %arg5[%c0_46, %c0_47] : memref<8x128xf32, #tpu.memory_space<vmem>>, vector<8x128xf32>
    tpu.vector_store %arg5[%c0_46, %c0_47], %77 {strides = array<i32>} : memref<8x128xf32, #tpu.memory_space<vmem>>, vector<8x128xf32>,
    %c0_48 = arith.constant 0 : index
    %c0_49 = arith.constant 0 : index
    %79 = vector.load %arg5[%c0_48, %c0_49] : memref<8x128xf32, #tpu.memory_space<vmem>>, vector<8x128xf32>
    %cst_50 = arith.constant 1.41421354 : f32
    %80 = vector.broadcast %cst_50 : f32 to vector<8x128xf32>
    %81 = arith.mulf %79, %80 : vector<8x128xf32>
    %c0_51 = arith.constant 0 : index
    %c0_52 = arith.constant 0 : index
    %82 = vector.load %arg5[%c0_51, %c0_52] : memref<8x128xf32, #tpu.memory_space<vmem>>, vector<8x128xf32>
    tpu.vector_store %arg5[%c0_51, %c0_52], %81 {strides = array<i32>} : memref<8x128xf32, #tpu.memory_space<vmem>>, vector<8x128xf32>,
    return
  }
  func.func @transform_0(%arg0: i32) -> (i32, i32) {
    %c0_i32 = arith.constant 0 : i32
    %c0_i32_0 = arith.constant 0 : i32
    return %arg0, %c0_i32 : i32, i32
  }
  func.func @transform_1(%arg0: i32) -> (i32, i32) {
    %c0_i32 = arith.constant 0 : i32
    %c0_i32_0 = arith.constant 0 : i32
    %c0_i32_1 = arith.constant 0 : i32
    return %c0_i32, %c0_i32_0 : i32, i32
  }
  func.func @transform_2(%arg0: i32) -> (i32, i32, i32) {
    %c0_i32 = arith.constant 0 : i32
    %c0_i32_0 = arith.constant 0 : i32
    %c0_i32_1 = arith.constant 0 : i32
    %c0_i32_2 = arith.constant 0 : i32
    return %c0_i32, %c0_i32_0, %c0_i32_1 : i32, i32, i32
  }
  func.func @transform_3(%arg0: i32) -> (i32, i32, i32) {
    %c0_i32 = arith.constant 0 : i32
    %c0_i32_0 = arith.constant 0 : i32
    %c0_i32_1 = arith.constant 0 : i32
    %c0_i32_2 = arith.constant 0 : i32
    return %c0_i32, %c0_i32_0, %c0_i32_1 : i32, i32, i32
  }
  func.func @transform_4(%arg0: i32) -> (i32, i32) {
    %c0_i32 = arith.constant 0 : i32
    %c0_i32_0 = arith.constant 0 : i32
    return %arg0, %c0_i32 : i32, i32
  }
}

</mosaic_0001>

<llo_original>
// kernel: mapping_forward.1
$region0: #{mapping_forward.1}
  #allocation0 [shape = 'u32[]', space=smem, size = 0x4, offset = 0x4, fixed_abs, tag = 'smem constant byte address 0x4 - core index']
  #allocation1 [shape = 'u32[144,128]{1,0:T(1,128)}', space=vmem, size = 0x12000, scoped, tag = 'internal scratch']
  %s0 = inlined_call_operand.vmem [shape: f32[8,128], index: 0, kind: input, shape index: {}]
  %s1 = inlined_call_operand.vmem [shape: f32[1,128], index: 1, kind: input, shape index: {}]
  %s2 = inlined_call_operand.hbm [shape: f32[3,128,128], index: 2, kind: input, shape index: {}]
  %s3 = inlined_call_operand.vmem [shape: f32[4,1,128], index: 3, kind: input, shape index: {}]
  %s4 = inlined_call_operand.vmem [shape: f32[8,128], index: 4, kind: output, shape index: {}]
  %s5 = sld [smem:[#allocation0]]
  $region30: #{mapping_forward.1} parent=0
    _
  %s7 = ssub.s32 1, %s5
  %s8 = scalar_select 0, %s7, %s5
  $region1: #{mapping_forward.1} parent=0
    #allocation2 [shape = 'u8[196608]{0}', space=vmem, size = 0x30000, scoped, tag = 'input window, operand 2, single buffered']
    #allocation3 [shape = 's32[1]{0}', space=sflag, size = 0x4, scoped, tag = 'scoped memory for mapping_forward.1']
    %9 = vsyncpa [#allocation3], 0
    // Predicated region
    $region2: #{mapping_forward.1} parent=1 // pred_check
      _
    $region3: #{mapping_forward.1} parent=1 // pred_check_branch
      %11 = sbr.rel (0) target = $region5
    $region4: #{mapping_forward.1} parent=1 // pred_region
      _
    $region5: #{mapping_forward.1} parent=1 // pred_fallthru
      _
    // Predicated region
    $region6: #{mapping_forward.1} parent=1 // pred_check
      _
    $region7: #{mapping_forward.1} parent=1 // pred_check_branch
      %13 = sbr.rel (0) target = $region9
    $region8: #{mapping_forward.1} parent=1 // pred_region
      _
    $region9: #{mapping_forward.1} parent=1 // pred_fallthru
      _
    // Predicated region
    $region10: #{mapping_forward.1} parent=1 // pred_check
      _
    $region11: #{mapping_forward.1} parent=1 // pred_check_branch
      %15 = sbr.rel (0) target = $region13
    $region12: #{mapping_forward.1} parent=1 // pred_region
      %s17 = ssub.s32 6144, 6144
      %18 = vsyncadd [#allocation3], %s17
      %s19 = sshll.u32 [#allocation2], 4
      %s20 = int_to_ptr.vmem [resolvable:$true] %s19
      %25 = dma.hbm_to_vmem [thread:$0]  %s2, 6144, %s20, [#allocation3], 128, 128, 8
    $region13: #{mapping_forward.1} parent=1 // pred_fallthru
      _
    // Predicated region
    $region14: #{mapping_forward.1} parent=1 // pred_check
      _
    $region15: #{mapping_forward.1} parent=1 // pred_check_branch
      %27 = sbr.rel (0) target = $region17
    $region16: #{mapping_forward.1} parent=1 // pred_region
      _
    $region17: #{mapping_forward.1} parent=1 // pred_fallthru
      _
    // Predicated region
    $region18: #{mapping_forward.1} parent=1 // pred_check
      _
    $region19: #{mapping_forward.1} parent=1 // pred_check_branch
      %29 = sbr.rel (0) target = $region21
    $region20: #{mapping_forward.1} parent=1 // pred_region
      %30 = dma.done [#allocation3], 6144
    $region21: #{mapping_forward.1} parent=1 // pred_fallthru
      _
    %s31 = smul.u32 0, 8
    %v32 = vlaneseq
    %v33 = vshrl.u32 %v32, 7
    %v34 = vstv %s31
    %v35 = vadd.s32 %v33, %v34
    %v36 = vlaneseq
    %v37 = vand.u32 %v36, 127
    %v38 = vshra.s32 %v37, 3
    %v39 = vmul.u32 %v35, 8
    %v40 = vadd.s32 %v39, %v38
    %v41 = vand.u32 %v40, 3
    %v42 = vld [vmem:[%s0] sm:$0xff]
    %v43 = vld [vmem:[%s1] sm:$0x1]
    %v45 = vlaneseq
    %v46 = vshrl.u32 %v45, 7
    %v47 = vsub.s32 0, %v46
    %v48 = vrot.slane %v43, %v47
    %v50 = vmul.f32 %v42, %v48
    %v51 = vld [vmem:[%s3] sm:$0x1]
    %v53 = vlaneseq
    %v54 = vshrl.u32 %v53, 7
    %v55 = vsub.s32 0, %v54
    %v56 = vrot.slane %v51, %v55
    %v58 = vadd.f32 %v50, %v56
    %v59 = vmul.f32 %v58, 0.2
    %v60 = vmax.f32 %v58, %v59
    %vm61 = vcmp.eq.s32.totalorder %v41, 0
    %v62 = vsel %vm61, %v60, 0.0
    %63 = vst [vmem:[%s4] sm:$0xff] %v62
    %v64 = vld [vmem:[#allocation2] sm:$0xff]
    %v65 = vld [vmem:[#allocation2 + $0x8] sm:$0xff]
    %v66 = vld [vmem:[#allocation2 + $0x10] sm:$0xff]
    %v67 = vld [vmem:[#allocation2 + $0x18] sm:$0xff]
    %v68 = vld [vmem:[#allocation2 + $0x20] sm:$0xff]
    %v69 = vld [vmem:[#allocation2 + $0x28] sm:$0xff]
    %v70 = vld [vmem:[#allocation2 + $0x30] sm:$0xff]
    %v71 = vld [vmem:[#allocation2 + $0x38] sm:$0xff]
    %v72 = vld [vmem:[#allocation2 + $0x40] sm:$0xff]
    %v73 = vld [vmem:[#allocation2 + $0x48] sm:$0xff]
    %v74 = vld [vmem:[#allocation2 + $0x50] sm:$0xff]
    %v75 = vld [vmem:[#allocation2 + $0x58] sm:$0xff]
    %v76 = vld [vmem:[#allocation2 + $0x60] sm:$0xff]
    %v77 = vld [vmem:[#allocation2 + $0x68] sm:$0xff]
    %v78 = vld [vmem:[#allocation2 + $0x70] sm:$0xff]
    %v79 = vld [vmem:[#allocation2 + $0x78] sm:$0xff]
    %s80 = scalar_lea.vmem %s3, 1
    %v81 = vld [vmem:[%s80] sm:$0x1]
    %v83 = vlaneseq
    %v84 = vshrl.u32 %v83, 7
    %v85 = vsub.s32 0, %v84
    %v86 = vrot.slane %v81, %v85
    %88 = vmatprep.subr.mxu0 0.0
    %89 = vmatpush1.msra.mxu0 %v64
    %90 = vmatprep.subr.mxu0 0.0
    %91 = vmatpush1.msra.mxu0 %v65
    %92 = vmatprep.subr.mxu0 0.0
    %93 = vmatpush1.msra.mxu0 %v66
    %94 = vmatprep.subr.mxu0 0.0
    %95 = vmatpush1.msra.mxu0 %v67
    %96 = vmatprep.subr.mxu0 0.0
    %97 = vmatpush1.msra.mxu0 %v68
    %98 = vmatprep.subr.mxu0 0.0
    %99 = vmatpush1.msra.mxu0 %v69
    %100 = vmatprep.subr.mxu0 0.0
    %101 = vmatpush1.msra.mxu0 %v70
    %102 = vmatprep.subr.mxu0 0.0
    %103 = vmatpush1.msra.mxu0 %v71
    %104 = vmatprep.subr.mxu0 0.0
    %105 = vmatpush1.msra.mxu0 %v72
    %106 = vmatprep.subr.mxu0 0.0
    %107 = vmatpush1.msra.mxu0 %v73
    %108 = vmatprep.subr.mxu0 0.0
    %109 = vmatpush1.msra.mxu0 %v74
    %110 = vmatprep.subr.mxu0 0.0
    %111 = vmatpush1.msra.mxu0 %v75
    %112 = vmatprep.subr.mxu0 0.0
    %113 = vmatpush1.msra.mxu0 %v76
    %114 = vmatprep.subr.mxu0 0.0
    %115 = vmatpush1.msra.mxu0 %v77
    %116 = vmatprep.subr.mxu0 0.0
    %117 = vmatpush1.msra.mxu0 %v78
    %118 = vmatprep.subr.mxu0 0.0
    %119 = vmatpush1.msra.mxu0 %v79
    %120 = vmatprep.subr.mxu0 0.0
    %121 = vmatpush1.msra.mxu0 0.0
    %122 = vmatprep.subr.mxu0 0.0
    %123 = vmatpush1.msra.mxu0 0.0
    %124 = vmatprep.subr.mxu0 0.0
    %125 = vmatpush1.msra.mxu0 0.0
    %126 = vmatprep.subr.mxu0 0.0
    %127 = vmatpush1.msra.mxu0 0.0
    %128 = vmatprep.subr.mxu0 0.0
    %129 = vmatpush1.msra.mxu0 0.0
    %130 = vmatprep.subr.mxu0 0.0
    %131 = vmatpush1.msra.mxu0 0.0
    %132 = vmatprep.subr.mxu0 0.0
    %133 = vmatpush1.msra.mxu0 0.0
    %134 = vmatprep.subr.mxu0 0.0
    %135 = vmatpush1.msra.mxu0 0.0
    %136 = vmatprep.subr.mxu0 0.0
    %137 = vmatpush1.msra.mxu0 0.0
    %138 = vmatprep.subr.mxu0 0.0
    %139 = vmatpush1.msra.mxu0 0.0
    %140 = vmatprep.subr.mxu0 0.0
    %141 = vmatpush1.msra.mxu0 0.0
    %142 = vmatprep.subr.mxu0 0.0
    %143 = vmatpush1.msra.mxu0 0.0
    %144 = vmatprep.subr.mxu0 0.0
    %145 = vmatpush1.msra.mxu0 0.0
    %146 = vmatprep.subr.mxu0 0.0
    %147 = vmatpush1.msra.mxu0 0.0
    %148 = vmatprep.subr.mxu0 0.0
    %149 = vmatpush1.msra.mxu0 0.0
    %150 = vmatprep.subr.mxu0 0.0
    %151 = vmatpush1.msra.mxu0 0.0
    %152 = vmatprep.mubr.f32.mxu0 0.0
    %153 = vmatmul.mubr.f32.gmra.mrb[0].mxu0 %v60
    %v154 = vpop.f32.mrb[0].mxu0
    %v155 = vadd.f32 %v86, %v154
    %v156 = vpop.f32.mrb[0].mxu0
    %157 = vdwg.mxu0
    %v158 = vmul.f32 %v155, 0.2
    %v159 = vmax.f32 %v155, %v158
    %v160 = vld [vmem:[%s4] sm:$0xff]
    %vm161 = vcmp.eq.s32.totalorder %v41, 1
    %v162 = vsel %vm161, %v159, 0.0
    %v163 = vadd.f32 %v160, %v162
    %164 = vst [vmem:[%s4] sm:$0xff] %v163
    %s165 = scalar_lea.vmem [#allocation2], 128
    %v166 = vld [vmem:[%s165] sm:$0xff]
    %v167 = vld [vmem:[%s165 + $0x8] sm:$0xff]
    %v168 = vld [vmem:[%s165 + $0x10] sm:$0xff]
    %v169 = vld [vmem:[%s165 + $0x18] sm:$0xff]
    %v170 = vld [vmem:[%s165 + $0x20] sm:$0xff]
    %v171 = vld [vmem:[%s165 + $0x28] sm:$0xff]
    %v172 = vld [vmem:[%s165 + $0x30] sm:$0xff]
    %v173 = vld [vmem:[%s165 + $0x38] sm:$0xff]
    %v174 = vld [vmem:[%s165 + $0x40] sm:$0xff]
    %v175 = vld [vmem:[%s165 + $0x48] sm:$0xff]
    %v176 = vld [vmem:[%s165 + $0x50] sm:$0xff]
    %v177 = vld [vmem:[%s165 + $0x58] sm:$0xff]
    %v178 = vld [vmem:[%s165 + $0x60] sm:$0xff]
    %v179 = vld [vmem:[%s165 + $0x68] sm:$0xff]
    %v180 = vld [vmem:[%s165 + $0x70] sm:$0xff]
    %v181 = vld [vmem:[%s165 + $0x78] sm:$0xff]
    %s182 = scalar_lea.vmem %s3, 2
    %v183 = vld [vmem:[%s182] sm:$0x1]
    %v185 = vlaneseq
    %v186 = vshrl.u32 %v185, 7
    %v187 = vsub.s32 0, %v186
    %v188 = vrot.slane %v183, %v187
    %190 = vmatprep.subr.mxu0 0.0
    %191 = vmatpush1.msra.mxu0 %v166
    %192 = vmatprep.subr.mxu0 0.0
    %193 = vmatpush1.msra.mxu0 %v167
    %194 = vmatprep.subr.mxu0 0.0
    %195 = vmatpush1.msra.mxu0 %v168
    %196 = vmatprep.subr.mxu0 0.0
    %197 = vmatpush1.msra.mxu0 %v169
    %198 = vmatprep.subr.mxu0 0.0
    %199 = vmatpush1.msra.mxu0 %v170
    %200 = vmatprep.subr.mxu0 0.0
    %201 = vmatpush1.msra.mxu0 %v171
    %202 = vmatprep.subr.mxu0 0.0
    %203 = vmatpush1.msra.mxu0 %v172
    %204 = vmatprep.subr.mxu0 0.0
    %205 = vmatpush1.msra.mxu0 %v173
    %206 = vmatprep.subr.mxu0 0.0
    %207 = vmatpush1.msra.mxu0 %v174
    %208 = vmatprep.subr.mxu0 0.0
    %209 = vmatpush1.msra.mxu0 %v175
    %210 = vmatprep.subr.mxu0 0.0
    %211 = vmatpush1.msra.mxu0 %v176
    %212 = vmatprep.subr.mxu0 0.0
    %213 = vmatpush1.msra.mxu0 %v177
    %214 = vmatprep.subr.mxu0 0.0
    %215 = vmatpush1.msra.mxu0 %v178
    %216 = vmatprep.subr.mxu0 0.0
    %217 = vmatpush1.msra.mxu0 %v179
    %218 = vmatprep.subr.mxu0 0.0
    %219 = vmatpush1.msra.mxu0 %v180
    %220 = vmatprep.subr.mxu0 0.0
    %221 = vmatpush1.msra.mxu0 %v181
    %222 = vmatprep.subr.mxu0 0.0
    %223 = vmatpush1.msra.mxu0 0.0
    %224 = vmatprep.subr.mxu0 0.0
    %225 = vmatpush1.msra.mxu0 0.0
    %226 = vmatprep.subr.mxu0 0.0
    %227 = vmatpush1.msra.mxu0 0.0
    %228 = vmatprep.subr.mxu0 0.0
    %229 = vmatpush1.msra.mxu0 0.0
    %230 = vmatprep.subr.mxu0 0.0
    %231 = vmatpush1.msra.mxu0 0.0
    %232 = vmatprep.subr.mxu0 0.0
    %233 = vmatpush1.msra.mxu0 0.0
    %234 = vmatprep.subr.mxu0 0.0
    %235 = vmatpush1.msra.mxu0 0.0
    %236 = vmatprep.subr.mxu0 0.0
    %237 = vmatpush1.msra.mxu0 0.0
    %238 = vmatprep.subr.mxu0 0.0
    %239 = vmatpush1.msra.mxu0 0.0
    %240 = vmatprep.subr.mxu0 0.0
    %241 = vmatpush1.msra.mxu0 0.0
    %242 = vmatprep.subr.mxu0 0.0
    %243 = vmatpush1.msra.mxu0 0.0
    %244 = vmatprep.subr.mxu0 0.0
    %245 = vmatpush1.msra.mxu0 0.0
    %246 = vmatprep.subr.mxu0 0.0
    %247 = vmatpush1.msra.mxu0 0.0
    %248 = vmatprep.subr.mxu0 0.0
    %249 = vmatpush1.msra.mxu0 0.0
    %250 = vmatprep.subr.mxu0 0.0
    %251 = vmatpush1.msra.mxu0 0.0
    %252 = vmatprep.subr.mxu0 0.0
    %253 = vmatpush1.msra.mxu0 0.0
    %254 = vmatprep.mubr.f32.mxu0 0.0
    %255 = vmatmul.mubr.f32.gmra.mrb[0].mxu0 %v159
    %v256 = vpop.f32.mrb[0].mxu0
    %v257 = vadd.f32 %v188, %v256
    %v258 = vpop.f32.mrb[0].mxu0
    %259 = vdwg.mxu0
    %v260 = vmul.f32 %v257, 0.2
    %v261 = vmax.f32 %v257, %v260
    %v262 = vld [vmem:[%s4] sm:$0xff]
    %vm263 = vcmp.eq.s32.totalorder %v41, 2
    %v264 = vsel %vm263, %v261, 0.0
    %v265 = vadd.f32 %v262, %v264
    %266 = vst [vmem:[%s4] sm:$0xff] %v265
    %s267 = scalar_lea.vmem [#allocation2], 256
    %v268 = vld [vmem:[%s267] sm:$0xff]
    %v269 = vld [vmem:[%s267 + $0x8] sm:$0xff]
    %v270 = vld [vmem:[%s267 + $0x10] sm:$0xff]
    %v271 = vld [vmem:[%s267 + $0x18] sm:$0xff]
    %v272 = vld [vmem:[%s267 + $0x20] sm:$0xff]
    %v273 = vld [vmem:[%s267 + $0x28] sm:$0xff]
    %v274 = vld [vmem:[%s267 + $0x30] sm:$0xff]
    %v275 = vld [vmem:[%s267 + $0x38] sm:$0xff]
    %v276 = vld [vmem:[%s267 + $0x40] sm:$0xff]
    %v277 = vld [vmem:[%s267 + $0x48] sm:$0xff]
    %v278 = vld [vmem:[%s267 + $0x50] sm:$0xff]
    %v279 = vld [vmem:[%s267 + $0x58] sm:$0xff]
    %v280 = vld [vmem:[%s267 + $0x60] sm:$0xff]
    %v281 = vld [vmem:[%s267 + $0x68] sm:$0xff]
    %v282 = vld [vmem:[%s267 + $0x70] sm:$0xff]
    %v283 = vld [vmem:[%s267 + $0x78] sm:$0xff]
    %s284 = scalar_lea.vmem %s3, 3
    %v285 = vld [vmem:[%s284] sm:$0x1]
    %v287 = vlaneseq
    %v288 = vshrl.u32 %v287, 7
    %v289 = vsub.s32 0, %v288
    %v290 = vrot.slane %v285, %v289
    %292 = vmatprep.subr.mxu0 0.0
    %293 = vmatpush1.msra.mxu0 %v268
    %294 = vmatprep.subr.mxu0 0.0
    %295 = vmatpush1.msra.mxu0 %v269
    %296 = vmatprep.subr.mxu0 0.0
    %297 = vmatpush1.msra.mxu0 %v270
    %298 = vmatprep.subr.mxu0 0.0
    %299 = vmatpush1.msra.mxu0 %v271
    %300 = vmatprep.subr.mxu0 0.0
    %301 = vmatpush1.msra.mxu0 %v272
    %302 = vmatprep.subr.mxu0 0.0
    %303 = vmatpush1.msra.mxu0 %v273
    %304 = vmatprep.subr.mxu0 0.0
    %305 = vmatpush1.msra.mxu0 %v274
    %306 = vmatprep.subr.mxu0 0.0
    %307 = vmatpush1.msra.mxu0 %v275
    %308 = vmatprep.subr.mxu0 0.0
    %309 = vmatpush1.msra.mxu0 %v276
    %310 = vmatprep.subr.mxu0 0.0
    %311 = vmatpush1.msra.mxu0 %v277
    %312 = vmatprep.subr.mxu0 0.0
    %313 = vmatpush1.msra.mxu0 %v278
    %314 = vmatprep.subr.mxu0 0.0
    %315 = vmatpush1.msra.mxu0 %v279
    %316 = vmatprep.subr.mxu0 0.0
    %317 = vmatpush1.msra.mxu0 %v280
    %318 = vmatprep.subr.mxu0 0.0
    %319 = vmatpush1.msra.mxu0 %v281
    %320 = vmatprep.subr.mxu0 0.0
    %321 = vmatpush1.msra.mxu0 %v282
    %322 = vmatprep.subr.mxu0 0.0
    %323 = vmatpush1.msra.mxu0 %v283
    %324 = vmatprep.subr.mxu0 0.0
    %325 = vmatpush1.msra.mxu0 0.0
    %326 = vmatprep.subr.mxu0 0.0
    %327 = vmatpush1.msra.mxu0 0.0
    %328 = vmatprep.subr.mxu0 0.0
    %329 = vmatpush1.msra.mxu0 0.0
    %330 = vmatprep.subr.mxu0 0.0
    %331 = vmatpush1.msra.mxu0 0.0
    %332 = vmatprep.subr.mxu0 0.0
    %333 = vmatpush1.msra.mxu0 0.0
    %334 = vmatprep.subr.mxu0 0.0
    %335 = vmatpush1.msra.mxu0 0.0
    %336 = vmatprep.subr.mxu0 0.0
    %337 = vmatpush1.msra.mxu0 0.0
    %338 = vmatprep.subr.mxu0 0.0
    %339 = vmatpush1.msra.mxu0 0.0
    %340 = vmatprep.subr.mxu0 0.0
    %341 = vmatpush1.msra.mxu0 0.0
    %342 = vmatprep.subr.mxu0 0.0
    %343 = vmatpush1.msra.mxu0 0.0
    %344 = vmatprep.subr.mxu0 0.0
    %345 = vmatpush1.msra.mxu0 0.0
    %346 = vmatprep.subr.mxu0 0.0
    %347 = vmatpush1.msra.mxu0 0.0
    %348 = vmatprep.subr.mxu0 0.0
    %349 = vmatpush1.msra.mxu0 0.0
    %350 = vmatprep.subr.mxu0 0.0
    %351 = vmatpush1.msra.mxu0 0.0
    %352 = vmatprep.subr.mxu0 0.0
    %353 = vmatpush1.msra.mxu0 0.0
    %354 = vmatprep.subr.mxu0 0.0
    %355 = vmatpush1.msra.mxu0 0.0
    %356 = vmatprep.mubr.f32.mxu0 0.0
    %357 = vmatmul.mubr.f32.gmra.mrb[0].mxu0 %v261
    %v358 = vpop.f32.mrb[0].mxu0
    %v359 = vadd.f32 %v290, %v358
    %v360 = vpop.f32.mrb[0].mxu0
    %361 = vdwg.mxu0
    %v362 = vmul.f32 %v359, 0.2
    %v363 = vmax.f32 %v359, %v362
    %v364 = vld [vmem:[%s4] sm:$0xff]
    %vm365 = vcmp.eq.s32.totalorder %v41, 3
    %v366 = vsel %vm365, %v363, 0.0
    %v367 = vadd.f32 %v364, %v366
    %368 = vst [vmem:[%s4] sm:$0xff] %v367
    %v369 = vld [vmem:[%s4] sm:$0xff]
    %v370 = vmul.f32 %v369, 1.4142135
    %371 = vst [vmem:[%s4] sm:$0xff] %v370
    // Predicated region
    $region22: #{mapping_forward.1} parent=1 // pred_check
      _
    $region23: #{mapping_forward.1} parent=1 // pred_check_branch
      %373 = sbr.rel (0) target = $region25
    $region24: #{mapping_forward.1} parent=1 // pred_region
      _
    $region25: #{mapping_forward.1} parent=1 // pred_fallthru
      _
    // Predicated region
    $region26: #{mapping_forward.1} parent=1 // pred_check
      _
    $region27: #{mapping_forward.1} parent=1 // pred_check_branch
      %375 = sbr.rel (0) target = $region29
    $region28: #{mapping_forward.1} parent=1 // pred_region
      _
    $region29: #{mapping_forward.1} parent=1 // pred_fallthru
      _
    %376 = vsyncpa [#allocation3], 1

</llo_original>
